<compile_context>
chip_gen: v7x
topology: tpu7x:2x2x1
jax: 0.10.0
libtpu: 0.0.40
codegen_flags: <defaults>
</compile_context>

<pallas_src>
import jax
import jax.numpy as jnp
from jax.experimental import pallas as pl
from jax.experimental.pallas import tpu as pltpu


def ltw_kernel(xt_ref, w1_ref, b1_ref, w2t_ref, b2_ref, o_ref):
    # xt_ref : (D_in, tm)   input tile, batch along lanes
    # w1_ref : (H, D_in)    first linear weight (PyTorch layout, fully resident)
    # b1_ref : (H, 1)       first linear bias (column)
    # w2t_ref: (H, D_out)   second linear weight, transposed to (H, D_out)
    # b2_ref : (D_out, 1)   second linear bias (column)
    # o_ref  : (D_out, tm)  output tile, batch along lanes (lane-dense store)
    xt = xt_ref[...]  # already f32, no cast needed

    # Linear 1 + ReLU:  (H, D_in) @ (D_in, tm) -> (H, tm)   (MXU + VPU)
    h = jnp.dot(w1_ref[...], xt, preferred_element_type=jnp.float32) + b1_ref[...]
    h = jnp.maximum(h, 0.0)

    d_out = w2t_ref.shape[1]
    if d_out == 1:
        # Second layer off the MXU: VPU multiply + sublane (XLU) reduction.
        # (H, tm) * (H, 1) -> (H, tm);  sum over H -> (1, tm)
        z = jnp.sum(h * w2t_ref[...], axis=0, keepdims=True) + b2_ref[...]
    else:
        # General case: (D_out, tm) = W2 @ h  via dot_general contracting on H.
        z = jax.lax.dot_general(
            w2t_ref[...], h, (((0,), (0,)), ((), ())),
            preferred_element_type=jnp.float32) + b2_ref[...]

    # Sigmoid (exp / recip go to the EUP), lane-dense store.
    o_ref[...] = jax.nn.sigmoid(z).astype(o_ref.dtype)


def ltw_forward(x, w1, b1, w2, b2, *, tm=512):
    """Pallas LTW forward (matches PyTorch LTW.forward).

    x  : (N, D_in)       float32
    w1 : (H, D_in)       float32   (PyTorch linear1.weight layout)
    b1 : (H,)            float32
    w2 : (D_out, H)      float32   (PyTorch linear2.weight layout)
    b2 : (D_out,)        float32
    returns (N, D_out)   float32 in (0, 1)
    """
    N, d_in = x.shape
    h_dim, d_in_w = w1.shape
    assert d_in_w == d_in
    d_out, h_dim_w = w2.shape
    assert h_dim_w == h_dim
    assert tm % 128 == 0, "row tile must be a multiple of 128 (lane width)"

    # Effective batch tile: large enough to amortize per-step overhead, but no
    # larger than the (128-rounded) batch itself.
    tm_eff = min(tm, pl.cdiv(N, 128) * 128)
    n_pad = pl.cdiv(N, tm_eff) * tm_eff

    # Pad batch (zeros) so every tile is full; padded rows are sliced off below.
    if n_pad != N:
        x = jnp.pad(x, ((0, n_pad - N), (0, 0)))

    # Layout plumbing in the wrapper: batch goes to the lane (last) axis.
    xt = x.T                       # (D_in, n_pad)
    w2t = w2.T                     # (H, D_out)
    b1_col = b1.reshape(h_dim, 1)  # (H, 1)
    b2_col = b2.reshape(d_out, 1)  # (D_out, 1)

    grid = (n_pad // tm_eff,)
    out_t = pl.pallas_call(
        ltw_kernel,
        out_shape=jax.ShapeDtypeStruct((d_out, n_pad), jnp.float32),
        grid_spec=pltpu.PrefetchScalarGridSpec(
            num_scalar_prefetch=0,
            grid=grid,
            in_specs=[
                pl.BlockSpec((d_in, tm_eff), lambda i: (0, i)),   # x^T tile
                pl.BlockSpec((h_dim, d_in), lambda i: (0, 0)),    # W1 (resident)
                pl.BlockSpec((h_dim, 1), lambda i: (0, 0)),       # b1
                pl.BlockSpec((h_dim, d_out), lambda i: (0, 0)),   # W2^T (resident)
                pl.BlockSpec((d_out, 1), lambda i: (0, 0)),       # b2
            ],
            out_specs=pl.BlockSpec((d_out, tm_eff), lambda i: (0, i)),
        ),
        compiler_params=pltpu.CompilerParams(
            dimension_semantics=("parallel",),  # lets v7x megacore shard the batch axis
        ),
    )(xt, w1, b1_col, w2t, b2_col)

    # Back to (N, D_out); drop padded rows.
    return out_t.T[:N]


def init_ltw_params(key, d_in, hidden, d_out):
    """Deterministic init mimicking nn.Linear's uniform(-1/sqrt(fan_in), 1/sqrt(fan_in))."""
    k1, k2, k3, k4 = jax.random.split(key, 4)
    bound1 = 1.0 / jnp.sqrt(d_in)
    bound2 = 1.0 / jnp.sqrt(hidden)
    w1 = jax.random.uniform(k1, (hidden, d_in), jnp.float32, -bound1, bound1)   # PyTorch layout
    b1 = jax.random.uniform(k2, (hidden,), jnp.float32, -bound1, bound1)
    w2 = jax.random.uniform(k3, (d_out, hidden), jnp.float32, -bound2, bound2)  # PyTorch layout
    b2 = jax.random.uniform(k4, (d_out,), jnp.float32, -bound2, bound2)
    return w1, b1, w2, b2


if __name__ == "__main__":
    # LTW is applied to per-sample losses: small feature dim, output = 1.
    N, D_IN, HIDDEN, D_OUT = 128, 8, 32, 1

    key = jax.random.PRNGKey(0)
    kx, kp = jax.random.split(key)
    x = jax.random.normal(kx, (N, D_IN), jnp.float32)
    w1, b1, w2, b2 = init_ltw_params(kp, D_IN, HIDDEN, D_OUT)

    out = ltw_forward(x, w1, b1, w2, b2, tm=512)
    out = jax.block_until_ready(out)

    # Reference in plain JAX (PyTorch semantics: y = x @ W.T + b).
    ref = jax.nn.sigmoid(jnp.maximum(x @ w1.T + b1, 0.0) @ w2.T + b2)
    assert out.shape == (N, D_OUT)
    assert jnp.allclose(out, ref, atol=1e-5, rtol=1e-5)

    print("KERNEL_OK")
</pallas_src>

<mosaic_0001>
module attributes {stable_mosaic.version = 11 : i64} {
  func.func @ltw_kernel(%arg0: i32, %arg1: memref<8x128xf32, #tpu.memory_space<vmem>>, %arg2: memref<32x8xf32, #tpu.memory_space<vmem>>, %arg3: memref<32x1xf32, #tpu.memory_space<vmem>>, %arg4: memref<32x1xf32, #tpu.memory_space<vmem>>, %arg5: memref<1x1xf32, #tpu.memory_space<vmem>>, %arg6: memref<1x128xf32, #tpu.memory_space<vmem>>) attributes {dimension_semantics = [#tpu.dimension_semantics<parallel>], iteration_bounds = array<i64: 1>, scalar_prefetch = 0 : i64, scratch_operands = 0 : i64, tpu.core_type = #tpu.core_type<tc>, window_params = [{transform_indices = @transform_0, window_bounds = array<i64: 8, 128>}, {pipeline_mode = #tpu.pipeline_mode<synchronous>, transform_indices = @transform_1, window_bounds = array<i64: 32, 8>}, {pipeline_mode = #tpu.pipeline_mode<synchronous>, transform_indices = @transform_2, window_bounds = array<i64: 32, 1>}, {pipeline_mode = #tpu.pipeline_mode<synchronous>, transform_indices = @transform_3, window_bounds = array<i64: 32, 1>}, {pipeline_mode = #tpu.pipeline_mode<synchronous>, transform_indices = @transform_4, window_bounds = array<i64: 1, 1>}, {transform_indices = @transform_5, window_bounds = array<i64: 1, 128>}]} {
    %c0 = arith.constant 0 : index
    %c0_0 = arith.constant 0 : index
    %0 = vector.load %arg1[%c0, %c0_0] : memref<8x128xf32, #tpu.memory_space<vmem>>, vector<8x128xf32>
    %c0_1 = arith.constant 0 : index
    %c0_2 = arith.constant 0 : index
    %1 = vector.load %arg2[%c0_1, %c0_2] : memref<32x8xf32, #tpu.memory_space<vmem>>, vector<32x8xf32>
    %cst = arith.constant dense<0.000000e+00> : vector<32x128xf32>
    %2 = tpu.matmul %1, %0, %cst {dimension_numbers = #tpu.dot_dimension_numbers<[1], [0], [0], [1], [0, 0, 1, 1], [], []>} : vector<32x8xf32>, vector<8x128xf32>, vector<32x128xf32> -> vector<32x128xf32>
    %c0_3 = arith.constant 0 : index
    %c0_4 = arith.constant 0 : index
    %3 = vector.load %arg3[%c0_3, %c0_4] : memref<32x1xf32, #tpu.memory_space<vmem>>, vector<32x1xf32>
    %4 = vector.broadcast %3 : vector<32x1xf32> to vector<32x128xf32>
    %5 = arith.addf %2, %4 : vector<32x128xf32>
    %cst_5 = arith.constant 0.000000e+00 : f32
    %6 = vector.broadcast %cst_5 : f32 to vector<32x128xf32>
    %7 = arith.maximumf %5, %6 : vector<32x128xf32>
    %c0_6 = arith.constant 0 : index
    %c0_7 = arith.constant 0 : index
    %8 = vector.load %arg4[%c0_6, %c0_7] : memref<32x1xf32, #tpu.memory_space<vmem>>, vector<32x1xf32>
    %9 = vector.broadcast %8 : vector<32x1xf32> to vector<32x128xf32>
    %10 = arith.mulf %7, %9 : vector<32x128xf32>
    %cst_8 = arith.constant dense<0.000000e+00> : vector<128xf32>
    %11 = vector.multi_reduction <add>, %10, %cst_8 [0] : vector<32x128xf32> to vector<128xf32>
    %12 = vector.shape_cast %11 : vector<128xf32> to vector<1x128xf32>
    %c0_9 = arith.constant 0 : index
    %c0_10 = arith.constant 0 : index
    %13 = vector.load %arg5[%c0_9, %c0_10] : memref<1x1xf32, #tpu.memory_space<vmem>>, vector<1x1xf32>
    %14 = vector.broadcast %13 : vector<1x1xf32> to vector<1x128xf32>
    %15 = arith.addf %12, %14 : vector<1x128xf32>
    %16 = arith.negf %15 : vector<1x128xf32>
    %17 = math.exp %16 : vector<1x128xf32>
    %cst_11 = arith.constant 1.000000e+00 : f32
    %18 = vector.broadcast %cst_11 : f32 to vector<1x128xf32>
    %19 = arith.addf %18, %17 : vector<1x128xf32>
    %20 = arith.divf %18, %19 : vector<1x128xf32>
    %c0_12 = arith.constant 0 : index
    %c0_13 = arith.constant 0 : index
    %21 = vector.load %arg6[%c0_12, %c0_13] : memref<1x128xf32, #tpu.memory_space<vmem>>, vector<1x128xf32>
    tpu.vector_store %arg6[%c0_12, %c0_13], %20 {strides = array<i32>} : memref<1x128xf32, #tpu.memory_space<vmem>>, vector<1x128xf32>,
    return
  }
  func.func @transform_0(%arg0: i32) -> (i32, i32) {
    %c0_i32 = arith.constant 0 : i32
    %c0_i32_0 = arith.constant 0 : i32
    return %c0_i32, %arg0 : i32, i32
  }
  func.func @transform_1(%arg0: i32) -> (i32, i32) {
    %c0_i32 = arith.constant 0 : i32
    %c0_i32_0 = arith.constant 0 : i32
    %c0_i32_1 = arith.constant 0 : i32
    return %c0_i32, %c0_i32_0 : i32, i32
  }
  func.func @transform_2(%arg0: i32) -> (i32, i32) {
    %c0_i32 = arith.constant 0 : i32
    %c0_i32_0 = arith.constant 0 : i32
    %c0_i32_1 = arith.constant 0 : i32
    return %c0_i32, %c0_i32_0 : i32, i32
  }
  func.func @transform_3(%arg0: i32) -> (i32, i32) {
    %c0_i32 = arith.constant 0 : i32
    %c0_i32_0 = arith.constant 0 : i32
    %c0_i32_1 = arith.constant 0 : i32
    return %c0_i32, %c0_i32_0 : i32, i32
  }
  func.func @transform_4(%arg0: i32) -> (i32, i32) {
    %c0_i32 = arith.constant 0 : i32
    %c0_i32_0 = arith.constant 0 : i32
    %c0_i32_1 = arith.constant 0 : i32
    return %c0_i32, %c0_i32_0 : i32, i32
  }
  func.func @transform_5(%arg0: i32) -> (i32, i32) {
    %c0_i32 = arith.constant 0 : i32
    %c0_i32_0 = arith.constant 0 : i32
    return %c0_i32, %arg0 : i32, i32
  }
}

</mosaic_0001>

<llo_original>
// kernel: tpu_custom_call.1
$region0: #{tpu_custom_call.1}
  #allocation0 [shape = 'u32[]', space=smem, size = 0x4, offset = 0x4, fixed_abs, tag = 'smem constant byte address 0x4 - core index']
  #allocation1 [shape = 'u32[144,128]{1,0:T(1,128)}', space=vmem, size = 0x12000, scoped, tag = 'internal scratch']
  #allocation2 [shape = 'f32[1,1]{1,0:T(1,128)S(1)}', space=vmem, size = 0x200, scoped, tag = 'scoped memory for tpu_custom_call.1']
  %s0 = inlined_call_operand.vmem [shape: f32[8,128], index: 0, kind: input, shape index: {}]
  %s1 = inlined_call_operand.vmem [shape: f32[32,8], index: 1, kind: input, shape index: {}]
  %s2 = inlined_call_operand.vmem [shape: f32[32,1], index: 2, kind: input, shape index: {}]
  %s3 = inlined_call_operand.vmem [shape: f32[32,1], index: 3, kind: input, shape index: {}]
  %s4 = inlined_call_operand.<no memory space> [shape: f32[1,1], index: 4, kind: input, shape index: {}]
  %s5 = inlined_call_operand.hbm [shape: f32[1,128], index: 5, kind: output, shape index: {}]
  %s6 = sld [smem:[#allocation0]]
  $region30: #{tpu_custom_call.1} parent=0
    _
  %s8 = ssub.s32 1, %s6
  %s9 = scalar_select 0, %s8, %s6
  %v10 = vstv %s4
  %11 = vst [vmem:[#allocation2] sm:$0x1] %v10
  $region1: #{tpu_custom_call.1} parent=0
    #allocation3 [shape = 'u8[512]{0}', space=vmem, size = 0x400, scoped, tag = 'output window, operand 0, single buffered']
    #allocation4 [shape = 's32[1]{0}', space=sflag, size = 0x4, scoped, tag = 'scoped memory for tpu_custom_call.1']
    %12 = vsyncpa [#allocation4], 0
    // Predicated region
    $region2: #{tpu_custom_call.1} parent=1 // pred_check
      _
    $region3: #{tpu_custom_call.1} parent=1 // pred_check_branch
      %14 = sbr.rel (0) target = $region5
    $region4: #{tpu_custom_call.1} parent=1 // pred_region
      _
    $region5: #{tpu_custom_call.1} parent=1 // pred_fallthru
      _
    // Predicated region
    $region6: #{tpu_custom_call.1} parent=1 // pred_check
      _
    $region7: #{tpu_custom_call.1} parent=1 // pred_check_branch
      %16 = sbr.rel (0) target = $region9
    $region8: #{tpu_custom_call.1} parent=1 // pred_region
      _
    $region9: #{tpu_custom_call.1} parent=1 // pred_fallthru
      _
    // Predicated region
    $region10: #{tpu_custom_call.1} parent=1 // pred_check
      _
    $region11: #{tpu_custom_call.1} parent=1 // pred_check_branch
      %18 = sbr.rel (0) target = $region13
    $region12: #{tpu_custom_call.1} parent=1 // pred_region
      _
    $region13: #{tpu_custom_call.1} parent=1 // pred_fallthru
      _
    // Predicated region
    $region14: #{tpu_custom_call.1} parent=1 // pred_check
      _
    $region15: #{tpu_custom_call.1} parent=1 // pred_check_branch
      %20 = sbr.rel (0) target = $region17
    $region16: #{tpu_custom_call.1} parent=1 // pred_region
      _
    $region17: #{tpu_custom_call.1} parent=1 // pred_fallthru
      _
    // Predicated region
    $region18: #{tpu_custom_call.1} parent=1 // pred_check
      _
    $region19: #{tpu_custom_call.1} parent=1 // pred_check_branch
      %22 = sbr.rel (0) target = $region21
    $region20: #{tpu_custom_call.1} parent=1 // pred_region
      _
    $region21: #{tpu_custom_call.1} parent=1 // pred_fallthru
      _
    %v23 = vld [vmem:[%s0] sm:$0xff]
    %v24 = vld [vmem:[%s1] sm:$0xff]
    %v25 = vld [vmem:[%s1 + $0x8] sm:$0xff]
    %v26 = vld [vmem:[%s1 + $0x10] sm:$0xff]
    %v27 = vld [vmem:[%s1 + $0x18] sm:$0xff]
    %v28 = vld [vmem:[%s2] sm:$0xff]
    %v29 = vld [vmem:[%s2 + $0x8] sm:$0xff]
    %v30 = vld [vmem:[%s2 + $0x10] sm:$0xff]
    %v31 = vld [vmem:[%s2 + $0x18] sm:$0xff]
    %33 = vset.pattern.permute.xlu0 0
    %34 = vperm.xlu0 %33, %v28
    %v35 = vpop.permute.xlu0 %34
    %38 = vset.pattern.permute.xlu0 0
    %39 = vperm.xlu0 %38, %v29
    %v40 = vpop.permute.xlu0 %39
    %43 = vset.pattern.permute.xlu0 0
    %44 = vperm.xlu0 %43, %v30
    %v45 = vpop.permute.xlu0 %44
    %48 = vset.pattern.permute.xlu0 0
    %49 = vperm.xlu0 %48, %v31
    %v50 = vpop.permute.xlu0 %49
    %vm52 = vcmask 64512
    %v54 = vsel %vm52, %v24, 0
    %v57 = vsel %vm52, %v25, 0
    %v60 = vsel %vm52, %v26, 0
    %v63 = vsel %vm52, %v27, 0
    %65 = vmatprep.subr.mxu0 0.0
    %66 = vmatpush1.msra.mxu0 %v23
    %67 = vmatprep.subr.mxu0 0.0
    %68 = vmatpush1.msra.mxu0 0.0
    %69 = vmatprep.subr.mxu0 0.0
    %70 = vmatpush1.msra.mxu0 0.0
    %71 = vmatprep.subr.mxu0 0.0
    %72 = vmatpush1.msra.mxu0 0.0
    %73 = vmatprep.subr.mxu0 0.0
    %74 = vmatpush1.msra.mxu0 0.0
    %75 = vmatprep.subr.mxu0 0.0
    %76 = vmatpush1.msra.mxu0 0.0
    %77 = vmatprep.subr.mxu0 0.0
    %78 = vmatpush1.msra.mxu0 0.0
    %79 = vmatprep.subr.mxu0 0.0
    %80 = vmatpush1.msra.mxu0 0.0
    %81 = vmatprep.subr.mxu0 0.0
    %82 = vmatpush1.msra.mxu0 0.0
    %83 = vmatprep.subr.mxu0 0.0
    %84 = vmatpush1.msra.mxu0 0.0
    %85 = vmatprep.subr.mxu0 0.0
    %86 = vmatpush1.msra.mxu0 0.0
    %87 = vmatprep.subr.mxu0 0.0
    %88 = vmatpush1.msra.mxu0 0.0
    %89 = vmatprep.subr.mxu0 0.0
    %90 = vmatpush1.msra.mxu0 0.0
    %91 = vmatprep.subr.mxu0 0.0
    %92 = vmatpush1.msra.mxu0 0.0
    %93 = vmatprep.subr.mxu0 0.0
    %94 = vmatpush1.msra.mxu0 0.0
    %95 = vmatprep.subr.mxu0 0.0
    %96 = vmatpush1.msra.mxu0 0.0
    %97 = vmatprep.subr.mxu0 0.0
    %98 = vmatpush1.msra.mxu0 0.0
    %99 = vmatprep.subr.mxu0 0.0
    %100 = vmatpush1.msra.mxu0 0.0
    %101 = vmatprep.subr.mxu0 0.0
    %102 = vmatpush1.msra.mxu0 0.0
    %103 = vmatprep.subr.mxu0 0.0
    %104 = vmatpush1.msra.mxu0 0.0
    %105 = vmatprep.subr.mxu0 0.0
    %106 = vmatpush1.msra.mxu0 0.0
    %107 = vmatprep.subr.mxu0 0.0
    %108 = vmatpush1.msra.mxu0 0.0
    %109 = vmatprep.subr.mxu0 0.0
    %110 = vmatpush1.msra.mxu0 0.0
    %111 = vmatprep.subr.mxu0 0.0
    %112 = vmatpush1.msra.mxu0 0.0
    %113 = vmatprep.subr.mxu0 0.0
    %114 = vmatpush1.msra.mxu0 0.0
    %115 = vmatprep.subr.mxu0 0.0
    %116 = vmatpush1.msra.mxu0 0.0
    %117 = vmatprep.subr.mxu0 0.0
    %118 = vmatpush1.msra.mxu0 0.0
    %119 = vmatprep.subr.mxu0 0.0
    %120 = vmatpush1.msra.mxu0 0.0
    %121 = vmatprep.subr.mxu0 0.0
    %122 = vmatpush1.msra.mxu0 0.0
    %123 = vmatprep.subr.mxu0 0.0
    %124 = vmatpush1.msra.mxu0 0.0
    %125 = vmatprep.subr.mxu0 0.0
    %126 = vmatpush1.msra.mxu0 0.0
    %127 = vmatprep.subr.mxu0 0.0
    %128 = vmatpush1.msra.mxu0 0.0
    %129 = vmatprep.mubr.f32.mxu0 0.0
    %130 = vmatmul.mubr.f32.gmra.mrb[0].mxu0 %v54
    %v131 = vpop.f32.mrb[0].mxu0
    %v132 = vadd.f32 %v35, %v131
    %v133 = vpop.f32.mrb[0].mxu0
    %134 = vmatprep.mubr.f32.mxu0 0.0
    %135 = vmatmul.mubr.f32.gmra.mrb[0].mxu0 %v57
    %v136 = vpop.f32.mrb[0].mxu0
    %v137 = vadd.f32 %v40, %v136
    %v138 = vpop.f32.mrb[0].mxu0
    %139 = vmatprep.mubr.f32.mxu0 0.0
    %140 = vmatmul.mubr.f32.gmra.mrb[0].mxu0 %v60
    %v141 = vpop.f32.mrb[0].mxu0
    %v142 = vadd.f32 %v45, %v141
    %v143 = vpop.f32.mrb[0].mxu0
    %144 = vmatprep.mubr.f32.mxu0 0.0
    %145 = vmatmul.mubr.f32.gmra.mrb[0].mxu0 %v63
    %v146 = vpop.f32.mrb[0].mxu0
    %v147 = vadd.f32 %v50, %v146
    %v148 = vpop.f32.mrb[0].mxu0
    %149 = vdwg.mxu0
    %v150 = vmax.f32 %v132, 0.0
    %v151 = vmax.f32 %v137, 0.0
    %v152 = vmax.f32 %v142, 0.0
    %v153 = vmax.f32 %v147, 0.0
    %v154 = vld [vmem:[%s3] sm:$0xff]
    %v155 = vld [vmem:[%s3 + $0x8] sm:$0xff]
    %v156 = vld [vmem:[%s3 + $0x10] sm:$0xff]
    %v157 = vld [vmem:[%s3 + $0x18] sm:$0xff]
    %159 = vset.pattern.permute.xlu0 0
    %160 = vperm.xlu0 %159, %v154
    %v161 = vpop.permute.xlu0 %160
    %164 = vset.pattern.permute.xlu0 0
    %165 = vperm.xlu0 %164, %v155
    %v166 = vpop.permute.xlu0 %165
    %169 = vset.pattern.permute.xlu0 0
    %170 = vperm.xlu0 %169, %v156
    %v171 = vpop.permute.xlu0 %170
    %174 = vset.pattern.permute.xlu0 0
    %175 = vperm.xlu0 %174, %v157
    %v176 = vpop.permute.xlu0 %175
    %v178 = vmul.f32 %v150, %v161
    %v179 = vmul.f32 %v151, %v166
    %v180 = vmul.f32 %v152, %v171
    %v181 = vmul.f32 %v153, %v176
    %v182 = vadd.f32 %v178, %v179
    %v183 = vadd.f32 %v182, %v180
    %v184 = vadd.f32 %v183, %v181
    %v185 = vrot.slane %v184, 4
    %v186 = vadd.f32 %v184, %v185
    %v187 = vrot.slane %v186, 2
    %v188 = vadd.f32 %v186, %v187
    %v189 = vrot.slane %v188, 1
    %v190 = vadd.f32 %v188, %v189
    %v191 = vld [vmem:[#allocation2] sm:$0x1]
    %193 = vset.pattern.permute.xlu0 0
    %194 = vperm.xlu0 %193, %v191
    %v195 = vpop.permute.xlu0 %194
    %v197 = vlaneseq
    %v198 = vshrl.u32 %v197, 7
    %v199 = vsub.s32 0, %v198
    %v200 = vrot.slane %v195, %v199
    %v201 = vadd.f32 %v190, %v200
    %v202 = vxor.u32 %v201, 2147483648
    %v203 = vmul.f32 %v202, 1.442695
    %v204 = vpow.pop %v203
    %v205 = vadd.f32 %v204, 1.0
    %v206 = vrcp.pop %v205
    %v207 = vmul.f32 1.0, %v206
    %208 = vst [vmem:[#allocation3] sm:$0x1] %v207
    // Predicated region
    $region22: #{tpu_custom_call.1} parent=1 // pred_check
      _
    $region23: #{tpu_custom_call.1} parent=1 // pred_check_branch
      %210 = sbr.rel (0) target = $region25
    $region24: #{tpu_custom_call.1} parent=1 // pred_region
      %s212 = ssub.s32 16, 16
      %213 = vsyncadd [#allocation4], %s212
      %s215 = sshll.u32 [#allocation3], 4
      %s216 = int_to_ptr.vmem [resolvable:$true] %s215
      %218 = dma.vmem_to_hbm [thread:$0]  %s216, 16, %s5, [#allocation4]
    $region25: #{tpu_custom_call.1} parent=1 // pred_fallthru
      _
    // Predicated region
    $region26: #{tpu_custom_call.1} parent=1 // pred_check
      _
    $region27: #{tpu_custom_call.1} parent=1 // pred_check_branch
      %220 = sbr.rel (0) target = $region29
    $region28: #{tpu_custom_call.1} parent=1 // pred_region
      %221 = dma.done [#allocation4], 16
    $region29: #{tpu_custom_call.1} parent=1 // pred_fallthru
      _
    %222 = vsyncpa [#allocation4], 1

</llo_original>
